<compile_context>
chip_gen: v7x
topology: tpu7x:2x2x1
jax: 0.10.0
libtpu: 0.0.40
codegen_flags: <defaults>
</compile_context>

<pallas_src>
import jax
import jax.numpy as jnp
from jax.experimental import pallas as pl
from jax.experimental.pallas import tpu as pltpu


def _copy_kernel(x_ref, o_ref):
    # Identity copy of one lane-dense tile (fusion site for downstream ops).
    o_ref[...] = x_ref[...]


def _sublane_multiple(dtype) -> int:
    # 32-bit -> 8, 16-bit -> 16, 8-bit -> 32 (sub-32-bit packs along sublanes).
    bits = jnp.dtype(dtype).itemsize * 8
    return max(8, 256 // bits)


def _vmem_budget():
    """Per-block byte budget + explicit scoped-VMEM limit, generation-aware."""
    block_budget = 8 * 1024 * 1024          # 8 MiB block; 4 in flight = 32 MiB
    vmem_limit = 48 * 1024 * 1024           # safe on v7x (64 MiB physical VMEM)
    try:
        cap = int(getattr(pltpu.get_tpu_info(), "vmem_capacity_bytes"))
        if cap >= 96 * 1024 * 1024:         # v5e / v6e: 128 MiB physical VMEM
            vmem_limit = 64 * 1024 * 1024
    except Exception:
        pass                                # unknown chip -> conservative caps
    return block_budget, vmem_limit


def _tiled_copy_2d(xv, tile_r, tile_c, vmem_limit, bytes_accessed, grid):
    """Identity copy of a 2-D view with the given block shape / grid."""
    if len(grid) == 1:
        in_spec = pl.BlockSpec((tile_r, tile_c), lambda i: (i, 0))
        out_spec = pl.BlockSpec((tile_r, tile_c), lambda i: (i, 0))
        semantics = ("parallel",)
    else:
        in_spec = pl.BlockSpec((tile_r, tile_c), lambda i, j: (i, j))
        out_spec = pl.BlockSpec((tile_r, tile_c), lambda i, j: (i, j))
        semantics = ("parallel", "parallel")

    return pl.pallas_call(
        _copy_kernel,
        out_shape=jax.ShapeDtypeStruct(xv.shape, xv.dtype),
        grid_spec=pltpu.PrefetchScalarGridSpec(
            num_scalar_prefetch=0,
            grid=grid,
            in_specs=[in_spec],
            out_specs=out_spec,
        ),
        compiler_params=pltpu.CompilerParams(
            dimension_semantics=semantics,
            vmem_limit_bytes=vmem_limit,
        ),
        cost_estimate=pl.CostEstimate(
            flops=0, transcendentals=0, bytes_accessed=bytes_accessed),
    )(xv)


def reshape_forward(x):
    """Pallas equivalent of `x.view(x.shape[0], -1)` for a contiguous input."""
    n = x.shape[0]
    flat = 1
    for d in x.shape[1:]:
        flat *= d

    total = n * flat
    itemsize = jnp.dtype(x.dtype).itemsize
    sub = _sublane_multiple(x.dtype)
    budget, vmem_limit = _vmem_budget()
    bytes_accessed = 2 * total * itemsize

    if total % 128 == 0:
        # Main path: metadata-only re-view of the contiguous bytes into a
        # lane-dense (rows, 128) slab. Each block = full rows of that slab,
        # i.e. one contiguous HBM burst, exact 128-wide unmasked stores.
        lanes = 128
        rows = total // lanes
        row_bytes = lanes * itemsize
        max_rows = max(sub, budget // row_bytes)
        if rows <= max_rows:
            tile_r = rows                          # full dim: always legal
        else:
            tile_r = max(sub, (max_rows // sub) * sub)
        xv = x.reshape(rows, lanes)
        out = _tiled_copy_2d(xv, tile_r, lanes, vmem_limit, bytes_accessed,
                             grid=(pl.cdiv(rows, tile_r),))
        return out.reshape(n, flat)                # metadata-only

    # Fallback (total not a multiple of 128, e.g. odd C*H*W): copy the logical
    # (n, flat) view with a byte-capped block; edge stores may be masked.
    x2 = x.reshape(n, flat)
    row_bytes = flat * itemsize
    if row_bytes * sub <= budget:
        tile_f = flat                              # full rows per block
        max_rows = max(sub, budget // max(1, row_bytes))
        tile_n = n if n <= max_rows else max(sub, (max_rows // sub) * sub)
    else:
        tile_f = min(flat, max(128, ((budget // (sub * itemsize)) // 128) * 128))
        tile_n = min(n, sub)
    out = _tiled_copy_2d(x2, tile_n, tile_f, vmem_limit, bytes_accessed,
                         grid=(pl.cdiv(n, tile_n), pl.cdiv(flat, tile_f)))
    return out


if __name__ == "__main__":
    key = jax.random.PRNGKey(0)
    # Small VGG-style feature map feeding the flatten.
    x = jax.random.normal(key, (2, 4, 16, 16), dtype=jnp.float32)

    out = reshape_forward(x)
    out = jax.block_until_ready(out)

    # Reference: plain JAX reshape (== torch .view(N, -1) on contiguous NCHW).
    ref = x.reshape(x.shape[0], -1)
    assert out.shape == (2, 4 * 16 * 16), out.shape
    assert out.dtype == x.dtype
    assert jnp.array_equal(out, ref), "Pallas flatten does not match reference"

    print("KERNEL_OK")
</pallas_src>

<mosaic_0001>
module attributes {stable_mosaic.version = 11 : i64} {
  func.func @_copy_kernel(%arg0: i32, %arg1: memref<16x128xf32, #tpu.memory_space<vmem>>, %arg2: memref<16x128xf32, #tpu.memory_space<vmem>>) attributes {dimension_semantics = [#tpu.dimension_semantics<parallel>], iteration_bounds = array<i64: 1>, scalar_prefetch = 0 : i64, scratch_operands = 0 : i64, tpu.core_type = #tpu.core_type<tc>, window_params = [{transform_indices = @transform_0, window_bounds = array<i64: 16, 128>}, {transform_indices = @transform_1, window_bounds = array<i64: 16, 128>}]} {
    %c0 = arith.constant 0 : index
    %c0_0 = arith.constant 0 : index
    %0 = vector.load %arg1[%c0, %c0_0] : memref<16x128xf32, #tpu.memory_space<vmem>>, vector<16x128xf32>
    %c0_1 = arith.constant 0 : index
    %c0_2 = arith.constant 0 : index
    %1 = vector.load %arg2[%c0_1, %c0_2] : memref<16x128xf32, #tpu.memory_space<vmem>>, vector<16x128xf32>
    tpu.vector_store %arg2[%c0_1, %c0_2], %0 {strides = array<i32>} : memref<16x128xf32, #tpu.memory_space<vmem>>, vector<16x128xf32>,
    return
  }
  func.func @transform_0(%arg0: i32) -> (i32, i32) {
    %c0_i32 = arith.constant 0 : i32
    %c0_i32_0 = arith.constant 0 : i32
    return %arg0, %c0_i32 : i32, i32
  }
  func.func @transform_1(%arg0: i32) -> (i32, i32) {
    %c0_i32 = arith.constant 0 : i32
    %c0_i32_0 = arith.constant 0 : i32
    return %arg0, %c0_i32 : i32, i32
  }
}

</mosaic_0001>

<llo_original>
// kernel: tpu_custom_call.1
$region0: #{tpu_custom_call.1}
  #allocation0 [shape = 'u32[]', space=smem, size = 0x4, offset = 0x4, fixed_abs, tag = 'smem constant byte address 0x4 - core index']
  #allocation1 [shape = 'u32[144,128]{1,0:T(1,128)}', space=vmem, size = 0x12000, scoped, tag = 'internal scratch']
  %s0 = inlined_call_operand.hbm [shape: f32[16,128], index: 0, kind: input, shape index: {}]
  %s1 = inlined_call_operand.hbm [shape: f32[16,128], index: 1, kind: output, shape index: {}]
  %s2 = sld [smem:[#allocation0]]
  $region18: #{tpu_custom_call.1} parent=0
    _
  %s4 = ssub.s32 1, %s2
  %s5 = scalar_select 0, %s4, %s2
  $region1: #{tpu_custom_call.1} parent=0
    #allocation2 [shape = 'u8[8192]{0}', space=vmem, size = 0x2000, scoped, tag = 'input window, operand 0, single buffered']
    #allocation3 [shape = 's32[1]{0}', space=sflag, size = 0x4, scoped, tag = 'scoped memory for tpu_custom_call.1']
    #allocation4 [shape = 's32[1]{0}', space=sflag, size = 0x4, scoped, tag = 'scoped memory for tpu_custom_call.1']
    #allocation5 [shape = 'u8[8192]{0}', space=vmem, size = 0x2000, scoped, tag = 'output window, operand 0, single buffered']
    %6 = vsyncpa [#allocation3], 0
    %7 = vsyncpa [#allocation4], 0
    // Predicated region
    $region2: #{tpu_custom_call.1} parent=1 // pred_check
      _
    $region3: #{tpu_custom_call.1} parent=1 // pred_check_branch
      %9 = sbr.rel (0) target = $region5
    $region4: #{tpu_custom_call.1} parent=1 // pred_region
      %s11 = ssub.s32 256, 256
      %12 = vsyncadd [#allocation3], %s11
      %s13 = sshll.u32 [#allocation2], 4
      %s14 = int_to_ptr.vmem [resolvable:$true] %s13
      %19 = dma.hbm_to_vmem [thread:$0]  %s0, 256, %s14, [#allocation3], 128, 128, 8
    $region5: #{tpu_custom_call.1} parent=1 // pred_fallthru
      _
    // Predicated region
    $region6: #{tpu_custom_call.1} parent=1 // pred_check
      _
    $region7: #{tpu_custom_call.1} parent=1 // pred_check_branch
      %21 = sbr.rel (0) target = $region9
    $region8: #{tpu_custom_call.1} parent=1 // pred_region
      %22 = dma.done [#allocation3], 256
    $region9: #{tpu_custom_call.1} parent=1 // pred_fallthru
      _
    %v23 = vld [vmem:[#allocation2] sm:$0xff]
    %v24 = vld [vmem:[#allocation2 + $0x8] sm:$0xff]
    %25 = vst [vmem:[#allocation5] sm:$0xff] %v23
    %26 = vst [vmem:[#allocation5 + $0x8] sm:$0xff] %v24
    // Predicated region
    $region10: #{tpu_custom_call.1} parent=1 // pred_check
      _
    $region11: #{tpu_custom_call.1} parent=1 // pred_check_branch
      %28 = sbr.rel (0) target = $region13
    $region12: #{tpu_custom_call.1} parent=1 // pred_region
      %s30 = ssub.s32 256, 256
      %31 = vsyncadd [#allocation4], %s30
      %s32 = sshll.u32 [#allocation5], 4
      %s33 = int_to_ptr.vmem [resolvable:$true] %s32
      %38 = dma.vmem_to_hbm [thread:$0]  %s33, 256, %s1, [#allocation4], 128, 128, 8
    $region13: #{tpu_custom_call.1} parent=1 // pred_fallthru
      _
    // Predicated region
    $region14: #{tpu_custom_call.1} parent=1 // pred_check
      _
    $region15: #{tpu_custom_call.1} parent=1 // pred_check_branch
      %40 = sbr.rel (0) target = $region17
    $region16: #{tpu_custom_call.1} parent=1 // pred_region
      %41 = dma.done [#allocation4], 256
    $region17: #{tpu_custom_call.1} parent=1 // pred_fallthru
      _
    %42 = vsyncpa [#allocation3], 1
    %43 = vsyncpa [#allocation4], 1

</llo_original>
